<compile_context>
chip_gen: v6e
topology: v6e:2x2x1
jax: 0.10.0
libtpu: 0.0.40
codegen_flags: <defaults>
</compile_context>

<pallas_src>
import functools

import jax
import jax.numpy as jnp
from jax.experimental import pallas as pl
from jax.experimental.pallas import tpu as pltpu


def _round_up(v: int, m: int) -> int:
    return (v + m - 1) // m * m


# ----------------------------------------------------------------------------
# Probe: is pipeline_mode=pl.Buffered(1) (single-buffered resident block)
# supported by this JAX / Mosaic?  Run once, cache the answer, fall back to
# default (double-buffered) pipelining if anything goes wrong.
# ----------------------------------------------------------------------------
@functools.lru_cache(maxsize=None)
def _single_buffered_weights_supported() -> bool:
    try:
        def _probe_kernel(a_ref, w_ref, o_ref):
            o_ref[...] = a_ref[...] + w_ref[...]

        a = jnp.arange(16 * 128, dtype=jnp.float32).reshape(16, 128)
        w = jnp.ones((8, 128), jnp.float32)
        f = pl.pallas_call(
            _probe_kernel,
            out_shape=jax.ShapeDtypeStruct((16, 128), jnp.float32),
            grid=(2,),
            in_specs=[
                pl.BlockSpec((8, 128), lambda i: (i, 0)),
                pl.BlockSpec((8, 128), lambda i: (0, 0),
                             pipeline_mode=pl.Buffered(1)),
            ],
            out_specs=pl.BlockSpec((8, 128), lambda i: (i, 0)),
        )
        y = jax.block_until_ready(f(a, w))
        return bool(jnp.allclose(y, a + 1.0))
    except Exception:
        return False


# ----------------------------------------------------------------------------
# Fused MLP kernel: x -> L layers of (x @ W + b), ReLU between hidden layers.
# refs layout: (x_ref, w0, b0, w1, b1, ..., w_{L-1}, b_{L-1}, o_ref)
# ----------------------------------------------------------------------------
def _fused_mlp_kernel(x_ref, *refs, n_layers: int, compute_dtype):
    o_ref = refs[-1]
    wb = refs[:-1]
    x = x_ref[...]                                    # [tm, d0_pad] f32
    for i in range(n_layers):                         # static unroll over layers
        w = wb[2 * i][...]                            # [din_pad, dout_pad]
        b = wb[2 * i + 1][...]                        # [1, dout_pad] f32
        # MXU matmul: operands optionally bf16, accumulation always f32.
        y = jnp.dot(x.astype(compute_dtype), w.astype(compute_dtype),
                    preferred_element_type=jnp.float32)
        y = y + b.astype(jnp.float32)                 # bias add in f32 (VPU)
        if i < n_layers - 1:                          # ReLU between hidden layers
            y = jnp.maximum(y, 0.0)
        x = y
    o_ref[...] = x.astype(o_ref.dtype)


def _choose_tm(batch: int) -> int:
    """Batch tile: >=2 tiles when B > 8 (v7x megacore), capped at 256 rows."""
    b8 = _round_up(batch, 8)
    if b8 <= 8:
        return b8
    # ceil(B/2) rounded to sublanes: guarantees >= 2 grid tiles so both v7x
    # TensorCores get work; cap at 256 (v6e/v7x MXU row width).  Extra grid
    # steps cost ~0.35us each -> negligible on single-TC v5e/v6e.
    return min(256, _round_up(-(-batch // 2), 8))


# ----------------------------------------------------------------------------
# One fused pallas_call over pre-padded params.
# ----------------------------------------------------------------------------
def fused_mlp(latent, padded_params):
    """latent: [B, d0] f32; padded_params: tuple of (W_pad, b_pad) from pad_params().

    Returns [B, dlast_pad] f32 (batch un-padded, features still lane-padded).
    """
    B, d0 = latent.shape
    n_layers = len(padded_params)
    w0 = padded_params[0][0]
    dims_pad = [w0.shape[0]] + [w.shape[1] for w, _ in padded_params]
    d0_pad, dlast_pad = dims_pad[0], dims_pad[-1]
    assert d0_pad == _round_up(d0, 128), (d0, d0_pad)

    compute_dtype = jnp.bfloat16 if w0.dtype == jnp.bfloat16 else jnp.float32

    # Batch tiling (sublane-aligned, megacore-aware).
    tm = _choose_tm(B)
    B_pad = _round_up(B, tm)
    n_tiles = B_pad // tm

    # Only the (cheap, per-batch) latent pad stays in the jitted hot path.
    x_pad = jnp.pad(latent, ((0, B_pad - B), (0, d0_pad - d0)))

    # Resident weights: single-buffer when supported (constant index_map =>
    # double-buffering buys nothing, only doubles VMEM; matters on v7x 64 MiB).
    if _single_buffered_weights_supported():
        resident_kwargs = dict(pipeline_mode=pl.Buffered(1))
        n_weight_buffers = 1
    else:
        resident_kwargs = {}
        n_weight_buffers = 2

    in_specs = [pl.BlockSpec((tm, d0_pad), lambda i: (i, 0))]
    flat_wb = []
    for w, b in padded_params:
        din_p, dout_p = w.shape
        flat_wb += [w, b]
        in_specs.append(
            pl.BlockSpec((din_p, dout_p), lambda i: (0, 0), **resident_kwargs))
        in_specs.append(
            pl.BlockSpec((1, dout_p), lambda i: (0, 0), **resident_kwargs))

    # ---- VMEM budget for the "all weights resident" design --------------
    wb_bytes = sum(int(a.size) * a.dtype.itemsize for a in flat_wb)
    io_bytes = 2 * tm * (d0_pad + dlast_pad) * 4          # double-buffered x/out tiles
    act_bytes = 2 * tm * max(dims_pad) * 4                # inter-layer activation headroom
    need = wb_bytes * n_weight_buffers + io_bytes + act_bytes
    vmem_cap = 56 * 1024 * 1024   # safe under v7x 64 MiB physical; fine on v5e/v6e (128 MiB)
    if need > vmem_cap:
        # TODO(synk): for hidden sizes whose resident weights exceed ~56 MiB,
        # stream W over a dout grid axis (512-1024 lane tiles) or cast to bf16.
        raise ValueError(
            f"Resident-weight MLP needs ~{need/2**20:.1f} MiB VMEM > {vmem_cap/2**20:.0f} MiB cap; "
            "use pad_params(use_bf16=True) or a weight-streaming layout.")
    vmem_limit = int(min(max(32 * 1024 * 1024, 2 * need), vmem_cap))

    # ---- Cost estimate so XLA schedules surrounding glue sensibly --------
    flops = 2 * B_pad * sum(w.shape[0] * w.shape[1] for w, _ in padded_params)
    bytes_accessed = (int(x_pad.size) * 4 + wb_bytes + B_pad * dlast_pad * 4)
    cost = pl.CostEstimate(flops=int(flops), transcendentals=0,
                           bytes_accessed=int(bytes_accessed))

    kernel = functools.partial(_fused_mlp_kernel, n_layers=n_layers,
                               compute_dtype=compute_dtype)

    out_pad = pl.pallas_call(
        kernel,
        out_shape=jax.ShapeDtypeStruct((B_pad, dlast_pad), jnp.float32),
        grid=(n_tiles,),
        in_specs=in_specs,
        out_specs=pl.BlockSpec((tm, dlast_pad), lambda i: (i, 0)),
        compiler_params=pltpu.CompilerParams(
            # Batch tiles are independent -> megacore-shardable on v7x.
            dimension_semantics=("parallel",),
            vmem_limit_bytes=vmem_limit,
        ),
        cost_estimate=cost,
    )(x_pad, *flat_wb)

    return out_pad[:B]          # trim batch padding (feature trim done by caller)


# ----------------------------------------------------------------------------
# Parameter init + one-time padding (out of the per-forward hot path).
# ----------------------------------------------------------------------------
def init_mlp_params(key, latent_dim, out_dim, hidden, n_layers):
    """Deterministic init matching nn.Linear default (U(-1/sqrt(fan_in), +))."""
    params = []
    dims_in = [latent_dim] + [hidden] * (n_layers - 1)
    dims_out = [hidden] * (n_layers - 1) + [out_dim]
    for din, dout in zip(dims_in, dims_out):
        kw, kb, key = jax.random.split(key, 3)
        bound = 1.0 / (din ** 0.5)
        w = jax.random.uniform(kw, (din, dout), jnp.float32, -bound, bound)
        b = jax.random.uniform(kb, (1, dout), jnp.float32, -bound, bound)
        params.append((w, b))
    return params


def pad_params(params, use_bf16: bool = False):
    """Pad every (W, b) once to 128-lane multiples. Zero padding is inert.

    use_bf16=True stores W in bfloat16 (v6e/v7x MXU-native, halves weight
    DMA/VMEM); bias stays f32 and accumulation stays f32 in the kernel.
    """
    padded = []
    for w, b in params:
        din, dout = w.shape
        din_p, dout_p = _round_up(din, 128), _round_up(dout, 128)
        w_p = jnp.pad(w, ((0, din_p - din), (0, dout_p - dout)))
        b_p = jnp.pad(b, ((0, 0), (0, dout_p - dout)))
        if use_bf16:
            w_p = w_p.astype(jnp.bfloat16)
        padded.append((w_p, b_p))
    return tuple(padded)


# ----------------------------------------------------------------------------
# MLPGenerator forward (jitted wrapper around the single fused kernel).
# ----------------------------------------------------------------------------
@functools.partial(jax.jit, static_argnames=("max_n", "set_channels", "n"))
def mlp_generator_forward(latent, padded_params, *, max_n, set_channels, n):
    """latent: [B, latent_dim] -> points: [B, n, set_channels]."""
    x = fused_mlp(latent, padded_params)               # [B, dlast_pad]
    batch_size = latent.shape[0]
    out_dim = max_n * set_channels
    points = x[:, :out_dim].reshape(batch_size, max_n, set_channels)
    return points[:, :n, :]


if __name__ == "__main__":
    # Small shapes consistent with the module.
    batch = 2
    latent_dim = 32
    mlp_gen_hidden = 32
    set_channels = 4
    max_n = 8
    n_layers = 3
    n = 6                                 # keep first n of max_n points

    key = jax.random.PRNGKey(0)
    k_lat, k_par = jax.random.split(key)

    latent = jax.random.normal(k_lat, (batch, latent_dim), jnp.float32)
    params = init_mlp_params(k_par, latent_dim, max_n * set_channels,
                             mlp_gen_hidden, n_layers)

    # Pad once at init time — never re-padded in the forward path.
    padded_params = pad_params(params, use_bf16=False)

    # Warm the Buffered(1) support probe outside the jitted trace.
    _single_buffered_weights_supported()

    points = mlp_generator_forward(latent, padded_params,
                                   max_n=max_n, set_channels=set_channels, n=n)
    points = jax.block_until_ready(points)

    assert points.shape == (batch, n, set_channels), points.shape
    assert points.dtype == jnp.float32

    # Pure-JAX reference check (f32 path must hit 1e-5).
    def ref_forward(x, ps):
        for i, (w, b) in enumerate(ps):
            x = x @ w + b
            if i < len(ps) - 1:
                x = jnp.maximum(x, 0.0)
        return x.reshape(batch, max_n, set_channels)[:, :n, :]

    ref = ref_forward(latent, params)
    assert jnp.allclose(points, ref, atol=1e-5, rtol=1e-5)

    # Optional bf16 operand fast path (opt-in; f32 accumulation). Smoke test
    # with a looser tolerance appropriate for bf16 operands.
    padded_params_bf16 = pad_params(params, use_bf16=True)
    points_bf16 = jax.block_until_ready(
        mlp_generator_forward(latent, padded_params_bf16,
                              max_n=max_n, set_channels=set_channels, n=n))
    assert points_bf16.shape == (batch, n, set_channels)
    assert jnp.allclose(points_bf16, ref, atol=1e-1, rtol=1e-1)

    print("KERNEL_OK")
</pallas_src>

<mosaic_0001>
module attributes {stable_mosaic.version = 11 : i64} {
  func.func @_probe_kernel(%arg0: i32, %arg1: memref<8x128xf32, #tpu.memory_space<vmem>>, %arg2: memref<8x128xf32, #tpu.memory_space<vmem>>, %arg3: memref<8x128xf32, #tpu.memory_space<vmem>>) attributes {dimension_semantics = [#tpu.dimension_semantics<arbitrary>], iteration_bounds = array<i64: 2>, scalar_prefetch = 0 : i64, scratch_operands = 0 : i64, tpu.core_type = #tpu.core_type<tc>, window_params = [{transform_indices = @transform_0, window_bounds = array<i64: 8, 128>}, {pipeline_mode = #tpu.pipeline_mode<synchronous>, transform_indices = @transform_1, window_bounds = array<i64: 8, 128>}, {transform_indices = @transform_2, window_bounds = array<i64: 8, 128>}]} {
    %c0 = arith.constant 0 : index
    %c0_0 = arith.constant 0 : index
    %0 = vector.load %arg1[%c0, %c0_0] : memref<8x128xf32, #tpu.memory_space<vmem>>, vector<8x128xf32>
    %c0_1 = arith.constant 0 : index
    %c0_2 = arith.constant 0 : index
    %1 = vector.load %arg2[%c0_1, %c0_2] : memref<8x128xf32, #tpu.memory_space<vmem>>, vector<8x128xf32>
    %2 = arith.addf %0, %1 : vector<8x128xf32>
    %c0_3 = arith.constant 0 : index
    %c0_4 = arith.constant 0 : index
    %3 = vector.load %arg3[%c0_3, %c0_4] : memref<8x128xf32, #tpu.memory_space<vmem>>, vector<8x128xf32>
    tpu.vector_store %arg3[%c0_3, %c0_4], %2 {strides = array<i32>} : memref<8x128xf32, #tpu.memory_space<vmem>>, vector<8x128xf32>,
    return
  }
  func.func @transform_0(%arg0: i32) -> (i32, i32) {
    %c0_i32 = arith.constant 0 : i32
    %c0_i32_0 = arith.constant 0 : i32
    return %arg0, %c0_i32 : i32, i32
  }
  func.func @transform_1(%arg0: i32) -> (i32, i32) {
    %c0_i32 = arith.constant 0 : i32
    %c0_i32_0 = arith.constant 0 : i32
    %c0_i32_1 = arith.constant 0 : i32
    return %c0_i32, %c0_i32_0 : i32, i32
  }
  func.func @transform_2(%arg0: i32) -> (i32, i32) {
    %c0_i32 = arith.constant 0 : i32
    %c0_i32_0 = arith.constant 0 : i32
    return %arg0, %c0_i32 : i32, i32
  }
}

module attributes {stable_mosaic.version = 11 : i64} {
  func.func @_fused_mlp_kernel(%arg0: i32, %arg1: memref<8x128xf32, #tpu.memory_space<vmem>>, %arg2: memref<128x128xf32, #tpu.memory_space<vmem>>, %arg3: memref<1x128xf32, #tpu.memory_space<vmem>>, %arg4: memref<128x128xf32, #tpu.memory_space<vmem>>, %arg5: memref<1x128xf32, #tpu.memory_space<vmem>>, %arg6: memref<128x128xf32, #tpu.memory_space<vmem>>, %arg7: memref<1x128xf32, #tpu.memory_space<vmem>>, %arg8: memref<8x128xf32, #tpu.memory_space<vmem>>) attributes {dimension_semantics = [#tpu.dimension_semantics<parallel>], iteration_bounds = array<i64: 1>, scalar_prefetch = 0 : i64, scratch_operands = 0 : i64, tpu.core_type = #tpu.core_type<tc>, window_params = [{transform_indices = @transform_0, window_bounds = array<i64: 8, 128>}, {pipeline_mode = #tpu.pipeline_mode<synchronous>, transform_indices = @transform_1, window_bounds = array<i64: 128, 128>}, {pipeline_mode = #tpu.pipeline_mode<synchronous>, transform_indices = @transform_2, window_bounds = array<i64: 1, 128>}, {pipeline_mode = #tpu.pipeline_mode<synchronous>, transform_indices = @transform_3, window_bounds = array<i64: 128, 128>}, {pipeline_mode = #tpu.pipeline_mode<synchronous>, transform_indices = @transform_4, window_bounds = array<i64: 1, 128>}, {pipeline_mode = #tpu.pipeline_mode<synchronous>, transform_indices = @transform_5, window_bounds = array<i64: 128, 128>}, {pipeline_mode = #tpu.pipeline_mode<synchronous>, transform_indices = @transform_6, window_bounds = array<i64: 1, 128>}, {transform_indices = @transform_7, window_bounds = array<i64: 8, 128>}]} {
    %c0 = arith.constant 0 : index
    %c0_0 = arith.constant 0 : index
    %0 = vector.load %arg1[%c0, %c0_0] : memref<8x128xf32, #tpu.memory_space<vmem>>, vector<8x128xf32>
    %c0_1 = arith.constant 0 : index
    %c0_2 = arith.constant 0 : index
    %1 = vector.load %arg2[%c0_1, %c0_2] : memref<128x128xf32, #tpu.memory_space<vmem>>, vector<128x128xf32>
    %c0_3 = arith.constant 0 : index
    %c0_4 = arith.constant 0 : index
    %2 = vector.load %arg3[%c0_3, %c0_4] : memref<1x128xf32, #tpu.memory_space<vmem>>, vector<1x128xf32>
    %cst = arith.constant dense<0.000000e+00> : vector<8x128xf32>
    %3 = tpu.matmul %0, %1, %cst {dimension_numbers = #tpu.dot_dimension_numbers<[1], [0], [0], [1], [0, 0, 1, 1], [], []>} : vector<8x128xf32>, vector<128x128xf32>, vector<8x128xf32> -> vector<8x128xf32>
    %4 = vector.broadcast %2 : vector<1x128xf32> to vector<8x128xf32>
    %5 = arith.addf %3, %4 : vector<8x128xf32>
    %cst_5 = arith.constant 0.000000e+00 : f32
    %6 = vector.broadcast %cst_5 : f32 to vector<8x128xf32>
    %7 = arith.maximumf %5, %6 : vector<8x128xf32>
    %c0_6 = arith.constant 0 : index
    %c0_7 = arith.constant 0 : index
    %8 = vector.load %arg4[%c0_6, %c0_7] : memref<128x128xf32, #tpu.memory_space<vmem>>, vector<128x128xf32>
    %c0_8 = arith.constant 0 : index
    %c0_9 = arith.constant 0 : index
    %9 = vector.load %arg5[%c0_8, %c0_9] : memref<1x128xf32, #tpu.memory_space<vmem>>, vector<1x128xf32>
    %cst_10 = arith.constant dense<0.000000e+00> : vector<8x128xf32>
    %10 = tpu.matmul %7, %8, %cst_10 {dimension_numbers = #tpu.dot_dimension_numbers<[1], [0], [0], [1], [0, 0, 1, 1], [], []>} : vector<8x128xf32>, vector<128x128xf32>, vector<8x128xf32> -> vector<8x128xf32>
    %11 = vector.broadcast %9 : vector<1x128xf32> to vector<8x128xf32>
    %12 = arith.addf %10, %11 : vector<8x128xf32>
    %cst_11 = arith.constant 0.000000e+00 : f32
    %13 = vector.broadcast %cst_11 : f32 to vector<8x128xf32>
    %14 = arith.maximumf %12, %13 : vector<8x128xf32>
    %c0_12 = arith.constant 0 : index
    %c0_13 = arith.constant 0 : index
    %15 = vector.load %arg6[%c0_12, %c0_13] : memref<128x128xf32, #tpu.memory_space<vmem>>, vector<128x128xf32>
    %c0_14 = arith.constant 0 : index
    %c0_15 = arith.constant 0 : index
    %16 = vector.load %arg7[%c0_14, %c0_15] : memref<1x128xf32, #tpu.memory_space<vmem>>, vector<1x128xf32>
    %cst_16 = arith.constant dense<0.000000e+00> : vector<8x128xf32>
    %17 = tpu.matmul %14, %15, %cst_16 {dimension_numbers = #tpu.dot_dimension_numbers<[1], [0], [0], [1], [0, 0, 1, 1], [], []>} : vector<8x128xf32>, vector<128x128xf32>, vector<8x128xf32> -> vector<8x128xf32>
    %18 = vector.broadcast %16 : vector<1x128xf32> to vector<8x128xf32>
    %19 = arith.addf %17, %18 : vector<8x128xf32>
    %c0_17 = arith.constant 0 : index
    %c0_18 = arith.constant 0 : index
    %20 = vector.load %arg8[%c0_17, %c0_18] : memref<8x128xf32, #tpu.memory_space<vmem>>, vector<8x128xf32>
    tpu.vector_store %arg8[%c0_17, %c0_18], %19 {strides = array<i32>} : memref<8x128xf32, #tpu.memory_space<vmem>>, vector<8x128xf32>,
    return
  }
  func.func @transform_0(%arg0: i32) -> (i32, i32) {
    %c0_i32 = arith.constant 0 : i32
    %c0_i32_0 = arith.constant 0 : i32
    return %arg0, %c0_i32 : i32, i32
  }
  func.func @transform_1(%arg0: i32) -> (i32, i32) {
    %c0_i32 = arith.constant 0 : i32
    %c0_i32_0 = arith.constant 0 : i32
    %c0_i32_1 = arith.constant 0 : i32
    return %c0_i32, %c0_i32_0 : i32, i32
  }
  func.func @transform_2(%arg0: i32) -> (i32, i32) {
    %c0_i32 = arith.constant 0 : i32
    %c0_i32_0 = arith.constant 0 : i32
    %c0_i32_1 = arith.constant 0 : i32
    return %c0_i32, %c0_i32_0 : i32, i32
  }
  func.func @transform_3(%arg0: i32) -> (i32, i32) {
    %c0_i32 = arith.constant 0 : i32
    %c0_i32_0 = arith.constant 0 : i32
    %c0_i32_1 = arith.constant 0 : i32
    return %c0_i32, %c0_i32_0 : i32, i32
  }
  func.func @transform_4(%arg0: i32) -> (i32, i32) {
    %c0_i32 = arith.constant 0 : i32
    %c0_i32_0 = arith.constant 0 : i32
    %c0_i32_1 = arith.constant 0 : i32
    return %c0_i32, %c0_i32_0 : i32, i32
  }
  func.func @transform_5(%arg0: i32) -> (i32, i32) {
    %c0_i32 = arith.constant 0 : i32
    %c0_i32_0 = arith.constant 0 : i32
    %c0_i32_1 = arith.constant 0 : i32
    return %c0_i32, %c0_i32_0 : i32, i32
  }
  func.func @transform_6(%arg0: i32) -> (i32, i32) {
    %c0_i32 = arith.constant 0 : i32
    %c0_i32_0 = arith.constant 0 : i32
    %c0_i32_1 = arith.constant 0 : i32
    return %c0_i32, %c0_i32_0 : i32, i32
  }
  func.func @transform_7(%arg0: i32) -> (i32, i32) {
    %c0_i32 = arith.constant 0 : i32
    %c0_i32_0 = arith.constant 0 : i32
    return %arg0, %c0_i32 : i32, i32
  }
}

</mosaic_0001>

<llo_original>
// kernel: tpu_custom_call.1
$region0: #{tpu_custom_call.1}
  #allocation0 [shape = 'u32[]', space=smem, size = 0x4, offset = 0x4, fixed_abs, tag = 'smem constant byte address 0x4 - core index']
  #allocation1 [shape = 'u32[144,128]{1,0:T(1,128)}', space=vmem, size = 0x12000, scoped, tag = 'internal scratch']
  %s0 = inlined_call_operand.hbm [shape: f32[16,128], index: 0, kind: input, shape index: {}]
  %s1 = inlined_call_operand.hbm [shape: f32[8,128], index: 1, kind: input, shape index: {}]
  %s2 = inlined_call_operand.hbm [shape: f32[16,128], index: 2, kind: output, shape index: {}]
  %s3 = sld [smem:[#allocation0]]
  $region49: #{tpu_custom_call.1} parent=0
    _
  %s5 = ssub.s32 1, %s3
  %s6 = scalar_select 0, %s5, %s3
  $region1: #{tpu_custom_call.1} parent=0
    #allocation2 [shape = 'u8[8192]{0}', space=vmem, size = 0x2000, scoped, tag = 'input window, operand 0']
    #allocation3 [shape = 's32[2]{0}', space=sflag, size = 0x8, scoped, tag = 'scoped memory for tpu_custom_call.1']
    #allocation4 [shape = 's32[2]{0}', space=sflag, size = 0x8, scoped, tag = 'scoped memory for tpu_custom_call.1']
    #allocation5 [shape = 'u8[4096]{0}', space=vmem, size = 0x1000, scoped, tag = 'input window, operand 1, single buffered']
    #allocation6 [shape = 's32[1]{0}', space=sflag, size = 0x4, scoped, tag = 'scoped memory for tpu_custom_call.1']
    #allocation7 [shape = 'u8[8192]{0}', space=vmem, size = 0x2000, scoped, tag = 'output window, operand 0']
    %7 = vsyncpa [#allocation3], 0
    %s8 = scalar_lea.sflag [#allocation3], 1
    %9 = vsyncpa %s8, 0
    %10 = vsyncpa [#allocation6], 0
    %11 = vsyncpa [#allocation4], 0
    %s12 = scalar_lea.sflag [#allocation4], 1
    %13 = vsyncpa %s12, 0
    loop: start=0, step=1, limit=4
    $region2: #{tpu_custom_call.1} parent=1 // loop_pre_header
      _
    $region3: #{tpu_custom_call.1} parent=1 // loop_header
      %s15 = sphi 0, %s19
      %p16 = scmp.ge.s32.totalorder %s15, 4
      %s25 = sphi 0, %s27
      %s28 = sphi 0, %s25
      %s29 = sphi 0, %s28
      %s45 = sphi 0, %s29
      %s49 = sphi 0, %s49
      %s51 = sphi 0, %s49
      %s52 = sphi 0, %s51
      %s66 = sphi 0, %s52
      %s72 = sphi 0, %s74
      %s75 = sphi 0, %s72
      %s76 = sphi 0, %s75
      %s92 = sphi 0, %s76
    $region4: #{tpu_custom_call.1} parent=1 // loop_header_branch
      %18 = sbr.rel (%p16) target = $region8
    $region5: #{tpu_custom_call.1} parent=1 // loop_body
      %s20 = ssub.s32 %s15, 1
      %s21 = ssub.s32 %s15, 2
      %s22 = sadd.s32 %s15, 1
      %s23 = ssub.s32 %s15, %s22
      %p24 = scmp.eq.s32.totalorder %s23, 0
      %s26 = sadd.s32 %s25, 1
      %s27 = scalar_select %p24, %s25, %s26
      %p30 = pneg %p24
      %p31 = scmp.eq.s32.totalorder %s15, 1
      %p32 = por %p30, %p31
      %p33 = scmp.ne.s32.totalorder %s25, %s28
      %p34 = scmp.eq.s32.totalorder %s15, 0
      %p35 = por %p33, %p34
      %p36 = scmp.ne.s32.totalorder %s25, %s28
      %p37 = scmp.eq.s32.totalorder %s20, 1
      %p38 = por %p36, %p37
      %p39 = scmp.ne.s32.totalorder %s28, %s29
      %p40 = scmp.eq.s32.totalorder %s20, 0
      %p41 = por %p39, %p40
      %p42 = scmp.ne.s32.totalorder %s28, %s29
      %p43 = scmp.eq.s32.totalorder %s21, 1
      %p44 = por %p42, %p43
      %p46 = scmp.ne.s32.totalorder %s29, %s45
      %p47 = scmp.eq.s32.totalorder %s21, 0
      %p48 = por %p46, %p47
      %s50 = sadd.s32 %s49, 1
      %p53 = scmp.eq.s32.totalorder %s15, 1
      %p54 = scmp.ne.s32.totalorder %s49, %s51
      %p55 = scmp.eq.s32.totalorder %s15, 0
      %p56 = por %p54, %p55
      %p57 = scmp.ne.s32.totalorder %s49, %s51
      %p58 = scmp.eq.s32.totalorder %s20, 1
      %p59 = por %p57, %p58
      %p60 = scmp.ne.s32.totalorder %s51, %s52
      %p61 = scmp.eq.s32.totalorder %s20, 0
      %p62 = por %p60, %p61
      %p63 = scmp.ne.s32.totalorder %s51, %s52
      %p64 = scmp.eq.s32.totalorder %s21, 1
      %p65 = por %p63, %p64
      %p67 = scmp.ne.s32.totalorder %s52, %s66
      %p68 = scmp.eq.s32.totalorder %s21, 0
      %p69 = por %p67, %p68
      %s70 = ssub.s32 %s15, %s22
      %p71 = scmp.eq.s32.totalorder %s70, 0
      %s73 = sadd.s32 %s72, 1
      %s74 = scalar_select %p71, %s72, %s73
      %p77 = pneg %p71
      %p78 = scmp.eq.s32.totalorder %s15, 1
      %p79 = por %p77, %p78
      %p80 = scmp.ne.s32.totalorder %s72, %s75
      %p81 = scmp.eq.s32.totalorder %s15, 0
      %p82 = por %p80, %p81
      %p83 = scmp.ne.s32.totalorder %s72, %s75
      %p84 = scmp.eq.s32.totalorder %s20, 1
      %p85 = por %p83, %p84
      %p86 = scmp.ne.s32.totalorder %s75, %s76
      %p87 = scmp.eq.s32.totalorder %s20, 0
      %p88 = por %p86, %p87
      %p89 = scmp.ne.s32.totalorder %s75, %s76
      %p90 = scmp.eq.s32.totalorder %s21, 1
      %p91 = por %p89, %p90
      %p93 = scmp.ne.s32.totalorder %s76, %s92
      %p94 = scmp.eq.s32.totalorder %s21, 0
      %p95 = por %p93, %p94
      %p96 = scmp.le.s32.totalorder 1, %s15
      %p97 = scmp.lt.s32.totalorder %s15, 3
      %p98 = pnand %p96, %p97
      %p99 = pneg %p98
      // Predicated region
      $region9: #{tpu_custom_call.1} parent=5 // pred_check
        _
      $region10: #{tpu_custom_call.1} parent=5 // pred_check_branch
        %101 = sbr.rel (%p98) target = $region12
      $region11: #{tpu_custom_call.1} parent=5 // pred_region
        %s102 = ssub.s32 %s15, 1
        // Predicated region
        $region13: #{tpu_custom_call.1} parent=11 // pred_check
          %p103 = pneg %p62
        $region14: #{tpu_custom_call.1} parent=11 // pred_check_branch
          %105 = sbr.rel (%p103) target = $region16
        $region15: #{tpu_custom_call.1} parent=11 // pred_region
          %s107 = ssub.s32 128, 128
          %108 = vsyncadd [#allocation6], %s107
          %s110 = sshll.u32 [#allocation5], 4
          %s111 = int_to_ptr.vmem [resolvable:$true] %s110
          %113 = dma.hbm_to_vmem [thread:$0]  %s1, 128, %s111, [#allocation6]
        $region16: #{tpu_custom_call.1} parent=11 // pred_fallthru
          _
      $region12: #{tpu_custom_call.1} parent=5 // pred_fallthru
        _
      %p114 = scmp.lt.s32.totalorder %s15, 2
      // Predicated region
      $region17: #{tpu_custom_call.1} parent=5 // pred_check
        %p115 = pneg %p114
      $region18: #{tpu_custom_call.1} parent=5 // pred_check_branch
        %117 = sbr.rel (%p115) target = $region20
      $region19: #{tpu_custom_call.1} parent=5 // pred_region
        // Predicated region
        $region21: #{tpu_custom_call.1} parent=19 // pred_check
          %p118 = pneg %p35
        $region22: #{tpu_custom_call.1} parent=19 // pred_check_branch
          %120 = sbr.rel (%p118) target = $region24
        $region23: #{tpu_custom_call.1} parent=19 // pred_region
          %s121 = sand.u32 %s25, 1
          %s122 = scalar_lea.sflag [#allocation3], %s121
          %s123 = sand.u32 %s25, 1
          %s124 = smul.addr %s123, 8
          %s125 = scalar_lea.vmem [#allocation2], %s124
          %s127 = ssub.s32 128, 128
          %128 = vsyncadd %s122, %s127
          %s129 = smul.addr %s15, 128
          %s130 = scalar_lea.hbm %s0, %s129
          %s132 = sshll.u32 %s125, 4
          %s133 = int_to_ptr.vmem [resolvable:$true] %s132
          %135 = dma.hbm_to_vmem [thread:$0]  %s130, 128, %s133, %s122
        $region24: #{tpu_custom_call.1} parent=19 // pred_fallthru
          _
      $region20: #{tpu_custom_call.1} parent=5 // pred_fallthru
        _
      %p136 = scmp.le.s32.totalorder 1, %s15
      %p137 = scmp.lt.s32.totalorder %s15, 3
      %p138 = pnand %p136, %p137
      %p139 = pneg %p138
      // Predicated region
      $region25: #{tpu_custom_call.1} parent=5 // pred_check
        _
      $region26: #{tpu_custom_call.1} parent=5 // pred_check_branch
        %141 = sbr.rel (%p138) target = $region28
      $region27: #{tpu_custom_call.1} parent=5 // pred_region
        %s142 = ssub.s32 %s15, 1
        %s143 = sand.u32 %s28, 1
        %s144 = scalar_lea.sflag [#allocation3], %s143
        %s145 = sand.u32 %s28, 1
        %s146 = smul.addr %s145, 8
        %s147 = scalar_lea.vmem [#allocation2], %s146
        // Predicated region
        $region29: #{tpu_custom_call.1} parent=27 // pred_check
          %p148 = pneg %p41
        $region30: #{tpu_custom_call.1} parent=27 // pred_check_branch
          %150 = sbr.rel (%p148) target = $region32
        $region31: #{tpu_custom_call.1} parent=27 // pred_region
          %151 = dma.done %s144, 128
        $region32: #{tpu_custom_call.1} parent=27 // pred_fallthru
          _
        // Predicated region
        $region33: #{tpu_custom_call.1} parent=27 // pred_check
          %p152 = pneg %p62
        $region34: #{tpu_custom_call.1} parent=27 // pred_check_branch
          %154 = sbr.rel (%p152) target = $region36
        $region35: #{tpu_custom_call.1} parent=27 // pred_region
          %155 = dma.done [#allocation6], 128
        $region36: #{tpu_custom_call.1} parent=27 // pred_fallthru
          _
        %s156 = sand.u32 %s28, 1
        %s157 = scalar_lea.sflag [#allocation3], %s156
        %s158 = sand.u32 %s28, 1
        %s159 = smul.addr %s158, 8
        %s160 = scalar_lea.vmem [#allocation2], %s159
        %p161 = pneg %p41
        %p162 = pneg %p38
        %p163 = pneg %p62
        %p164 = pneg %p59
        %p165 = pneg %p88
        %p166 = pneg %p85
        %s167 = sand.u32 %s75, 1
        %s168 = scalar_lea.sflag [#allocation4], %s167
        %s169 = sand.u32 %s75, 1
        %s170 = smul.addr %s169, 8
        %s171 = scalar_lea.vmem [#allocation7], %s170
        %v172 = vld [vmem:[%s147] sm:$0xff]
        %v173 = vld [vmem:[#allocation5] sm:$0xff]
        %v174 = vadd.f32 %v172, %v173
        %175 = vst [vmem:[%s171] sm:$0xff] %v174
        %s176 = sand.u32 %s75, 1
        %s177 = scalar_lea.sflag [#allocation4], %s176
        %s178 = sand.u32 %s75, 1
        %s179 = smul.addr %s178, 8
        %s180 = scalar_lea.vmem [#allocation7], %s179
        // Predicated region
        $region37: #{tpu_custom_call.1} parent=27 // pred_check
          %p181 = pneg %p85
        $region38: #{tpu_custom_call.1} parent=27 // pred_check_branch
          %183 = sbr.rel (%p181) target = $region40
        $region39: #{tpu_custom_call.1} parent=27 // pred_region
          %s185 = ssub.s32 128, 128
          %186 = vsyncadd %s177, %s185
          %s187 = smul.addr %s20, 128
          %s188 = scalar_lea.hbm %s2, %s187
          %s190 = sshll.u32 %s180, 4
          %s191 = int_to_ptr.vmem [resolvable:$true] %s190
          %193 = dma.vmem_to_hbm [thread:$0]  %s191, 128, %s188, %s177
        $region40: #{tpu_custom_call.1} parent=27 // pred_fallthru
          _
      $region28: #{tpu_custom_call.1} parent=5 // pred_fallthru
        _
      %p194 = scmp.le.s32.totalorder 2, %s15
      // Predicated region
      $region41: #{tpu_custom_call.1} parent=5 // pred_check
        %p195 = pneg %p194
      $region42: #{tpu_custom_call.1} parent=5 // pred_check_branch
        %197 = sbr.rel (%p195) target = $region44
      $region43: #{tpu_custom_call.1} parent=5 // pred_region
        %s198 = ssub.s32 %s15, 2
        // Predicated region
        $region45: #{tpu_custom_call.1} parent=43 // pred_check
          %p199 = pneg %p91
        $region46: #{tpu_custom_call.1} parent=43 // pred_check_branch
          %201 = sbr.rel (%p199) target = $region48
        $region47: #{tpu_custom_call.1} parent=43 // pred_region
          %s202 = sand.u32 %s76, 1
          %s203 = scalar_lea.sflag [#allocation4], %s202
          %s204 = sand.u32 %s76, 1
          %s205 = smul.addr %s204, 8
          %s206 = scalar_lea.vmem [#allocation7], %s205
          %207 = dma.done %s203, 128
        $region48: #{tpu_custom_call.1} parent=43 // pred_fallthru
          _
      $region44: #{tpu_custom_call.1} parent=5 // pred_fallthru
        _
    $region6: #{tpu_custom_call.1} parent=1 // loop_footer
      %s19 = sadd.s32 1, %s15
    $region7: #{tpu_custom_call.1} parent=1 // loop_footer_branch
      %14 = sbr.rel target = $region3
    $region8: #{tpu_custom_call.1} parent=1 // loop_exit
      _
    %208 = vsyncpa [#allocation3], 1
    %s209 = scalar_lea.sflag [#allocation3], 1
    %210 = vsyncpa %s209, 1
    %211 = vsyncpa [#allocation6], 1
    %212 = vsyncpa [#allocation4], 1
    %s213 = scalar_lea.sflag [#allocation4], 1
    %214 = vsyncpa %s213, 1

// kernel: mlp_generator_forward.1
$region0: #{mlp_generator_forward.1}
  #allocation0 [shape = 'u32[]', space=smem, size = 0x4, offset = 0x4, fixed_abs, tag = 'smem constant byte address 0x4 - core index']
  #allocation1 [shape = 'u32[144,128]{1,0:T(1,128)}', space=vmem, size = 0x12000, scoped, tag = 'internal scratch']
  %s0 = inlined_call_operand.vmem [shape: f32[8,128], index: 0, kind: input, shape index: {}]
  %s1 = inlined_call_operand.hbm [shape: f32[128,128], index: 1, kind: input, shape index: {}]
  %s2 = inlined_call_operand.vmem [shape: f32[1,128], index: 2, kind: input, shape index: {}]
  %s3 = inlined_call_operand.hbm [shape: f32[128,128], index: 3, kind: input, shape index: {}]
  %s4 = inlined_call_operand.vmem [shape: f32[1,128], index: 4, kind: input, shape index: {}]
  %s5 = inlined_call_operand.hbm [shape: f32[128,128], index: 5, kind: input, shape index: {}]
  %s6 = inlined_call_operand.vmem [shape: f32[1,128], index: 6, kind: input, shape index: {}]
  %s7 = inlined_call_operand.vmem [shape: f32[8,128], index: 7, kind: output, shape index: {}]
  %s8 = sld [smem:[#allocation0]]
  $region50: #{mlp_generator_forward.1} parent=0
    _
  %s10 = ssub.s32 1, %s8
  %s11 = scalar_select 0, %s10, %s8
  $region1: #{mlp_generator_forward.1} parent=0
    #allocation2 [shape = 'u8[65536]{0}', space=vmem, size = 0x10000, scoped, tag = 'input window, operand 1, single buffered']
    #allocation3 [shape = 's32[1]{0}', space=sflag, size = 0x4, scoped, tag = 'scoped memory for mlp_generator_forward.1']
    #allocation4 [shape = 'u8[65536]{0}', space=vmem, size = 0x10000, scoped, tag = 'input window, operand 3, single buffered']
    #allocation5 [shape = 's32[1]{0}', space=sflag, size = 0x4, scoped, tag = 'scoped memory for mlp_generator_forward.1']
    #allocation6 [shape = 'u8[65536]{0}', space=vmem, size = 0x10000, scoped, tag = 'input window, operand 5, single buffered']
    %12 = vsyncpa [#allocation3], 0
    %13 = vsyncpa [#allocation5], 0
    // Predicated region
    $region2: #{mlp_generator_forward.1} parent=1 // pred_check
      _
    $region3: #{mlp_generator_forward.1} parent=1 // pred_check_branch
      %15 = sbr.rel (0) target = $region5
    $region4: #{mlp_generator_forward.1} parent=1 // pred_region
      _
    $region5: #{mlp_generator_forward.1} parent=1 // pred_fallthru
      _
    // Predicated region
    $region6: #{mlp_generator_forward.1} parent=1 // pred_check
      _
    $region7: #{mlp_generator_forward.1} parent=1 // pred_check_branch
      %17 = sbr.rel (0) target = $region9
    $region8: #{mlp_generator_forward.1} parent=1 // pred_region
      %s19 = ssub.s32 2048, 2048
      %20 = vsyncadd [#allocation3], %s19
      %s21 = sshll.u32 [#allocation2], 4
      %s22 = int_to_ptr.vmem [resolvable:$true] %s21
      %27 = dma.hbm_to_vmem [thread:$0]  %s1, 2048, %s22, [#allocation3], 128, 128, 8
    $region9: #{mlp_generator_forward.1} parent=1 // pred_fallthru
      _
    // Predicated region
    $region10: #{mlp_generator_forward.1} parent=1 // pred_check
      _
    $region11: #{mlp_generator_forward.1} parent=1 // pred_check_branch
      %29 = sbr.rel (0) target = $region13
    $region12: #{mlp_generator_forward.1} parent=1 // pred_region
      _
    $region13: #{mlp_generator_forward.1} parent=1 // pred_fallthru
      _
    // Predicated region
    $region14: #{mlp_generator_forward.1} parent=1 // pred_check
      _
    $region15: #{mlp_generator_forward.1} parent=1 // pred_check_branch
      %31 = sbr.rel (0) target = $region17
    $region16: #{mlp_generator_forward.1} parent=1 // pred_region
      %s33 = ssub.s32 2048, 2048
      %34 = vsyncadd [#allocation5], %s33
      %s35 = sshll.u32 [#allocation4], 4
      %s36 = int_to_ptr.vmem [resolvable:$true] %s35
      %41 = dma.hbm_to_vmem [thread:$0]  %s3, 2048, %s36, [#allocation5], 128, 128, 8
    $region17: #{mlp_generator_forward.1} parent=1 // pred_fallthru
      _
    // Predicated region
    $region18: #{mlp_generator_forward.1} parent=1 // pred_check
      _
    $region19: #{mlp_generator_forward.1} parent=1 // pred_check_branch
      %43 = sbr.rel (0) target = $region21
    $region20: #{mlp_generator_forward.1} parent=1 // pred_region
      _
    $region21: #{mlp_generator_forward.1} parent=1 // pred_fallthru
      _
    // Predicated region
    $region22: #{mlp_generator_forward.1} parent=1 // pred_check
      _
    $region23: #{mlp_generator_forward.1} parent=1 // pred_check_branch
      %45 = sbr.rel (0) target = $region25
    $region24: #{mlp_generator_forward.1} parent=1 // pred_region
      %s47 = ssub.s32 2048, 2048
      %48 = vsyncadd [#allocation5], %s47
      %s49 = sshll.u32 [#allocation6], 4
      %s50 = int_to_ptr.vmem [resolvable:$true] %s49
      %55 = dma.hbm_to_vmem [thread:$0]  %s5, 2048, %s50, [#allocation5], 128, 128, 8
    $region25: #{mlp_generator_forward.1} parent=1 // pred_fallthru
      _
    // Predicated region
    $region26: #{mlp_generator_forward.1} parent=1 // pred_check
      _
    $region27: #{mlp_generator_forward.1} parent=1 // pred_check_branch
      %57 = sbr.rel (0) target = $region29
    $region28: #{mlp_generator_forward.1} parent=1 // pred_region
      _
    $region29: #{mlp_generator_forward.1} parent=1 // pred_fallthru
      _
    // Predicated region
    $region30: #{mlp_generator_forward.1} parent=1 // pred_check
      _
    $region31: #{mlp_generator_forward.1} parent=1 // pred_check_branch
      %59 = sbr.rel (0) target = $region33
    $region32: #{mlp_generator_forward.1} parent=1 // pred_region
      %60 = dma.done [#allocation3], 2048
    $region33: #{mlp_generator_forward.1} parent=1 // pred_fallthru
      _
    // Predicated region
    $region34: #{mlp_generator_forward.1} parent=1 // pred_check
      _
    $region35: #{mlp_generator_forward.1} parent=1 // pred_check_branch
      %62 = sbr.rel (0) target = $region37
    $region36: #{mlp_generator_forward.1} parent=1 // pred_region
      %63 = dma.done [#allocation5], 2048
    $region37: #{mlp_generator_forward.1} parent=1 // pred_fallthru
      _
    // Predicated region
    $region38: #{mlp_generator_forward.1} parent=1 // pred_check
      _
    $region39: #{mlp_generator_forward.1} parent=1 // pred_check_branch
      %65 = sbr.rel (0) target = $region41
    $region40: #{mlp_generator_forward.1} parent=1 // pred_region
      %66 = dma.done [#allocation5], 2048
    $region41: #{mlp_generator_forward.1} parent=1 // pred_fallthru
      _
    %v67 = vld [vmem:[%s0] sm:$0xff]
    %v68 = vld [vmem:[#allocation2] sm:$0xff]
    %v69 = vld [vmem:[#allocation2 + $0x8] sm:$0xff]
    %v70 = vld [vmem:[#allocation2 + $0x10] sm:$0xff]
    %v71 = vld [vmem:[#allocation2 + $0x18] sm:$0xff]
    %v72 = vld [vmem:[#allocation2 + $0x20] sm:$0xff]
    %v73 = vld [vmem:[#allocation2 + $0x28] sm:$0xff]
    %v74 = vld [vmem:[#allocation2 + $0x30] sm:$0xff]
    %v75 = vld [vmem:[#allocation2 + $0x38] sm:$0xff]
    %v76 = vld [vmem:[#allocation2 + $0x40] sm:$0xff]
    %v77 = vld [vmem:[#allocation2 + $0x48] sm:$0xff]
    %v78 = vld [vmem:[#allocation2 + $0x50] sm:$0xff]
    %v79 = vld [vmem:[#allocation2 + $0x58] sm:$0xff]
    %v80 = vld [vmem:[#allocation2 + $0x60] sm:$0xff]
    %v81 = vld [vmem:[#allocation2 + $0x68] sm:$0xff]
    %v82 = vld [vmem:[#allocation2 + $0x70] sm:$0xff]
    %v83 = vld [vmem:[#allocation2 + $0x78] sm:$0xff]
    %v84 = vld [vmem:[%s2] sm:$0x1]
    %v86 = vlaneseq
    %v87 = vshrl.u32 %v86, 7
    %v88 = vsub.s32 0, %v87
    %v89 = vrot.slane %v84, %v88
    %91 = vmatprep.subr.mxu0 0.0
    %92 = vmatpush1.msra.mxu0 %v83
    %93 = vmatprep.subr.mxu0 0.0
    %94 = vmatpush1.msra.mxu0 %v82
    %95 = vmatprep.subr.mxu0 0.0
    %96 = vmatpush1.msra.mxu0 %v81
    %97 = vmatprep.subr.mxu0 0.0
    %98 = vmatpush1.msra.mxu0 %v80
    %99 = vmatprep.subr.mxu0 0.0
    %100 = vmatpush1.msra.mxu0 %v79
    %101 = vmatprep.subr.mxu0 0.0
    %102 = vmatpush1.msra.mxu0 %v78
    %103 = vmatprep.subr.mxu0 0.0
    %104 = vmatpush1.msra.mxu0 %v77
    %105 = vmatprep.subr.mxu0 0.0
    %106 = vmatpush1.msra.mxu0 %v76
    %107 = vmatprep.subr.mxu0 0.0
    %108 = vmatpush1.msra.mxu0 %v75
    %109 = vmatprep.subr.mxu0 0.0
    %110 = vmatpush1.msra.mxu0 %v74
    %111 = vmatprep.subr.mxu0 0.0
    %112 = vmatpush1.msra.mxu0 %v73
    %113 = vmatprep.subr.mxu0 0.0
    %114 = vmatpush1.msra.mxu0 %v72
    %115 = vmatprep.subr.mxu0 0.0
    %116 = vmatpush1.msra.mxu0 %v71
    %117 = vmatprep.subr.mxu0 0.0
    %118 = vmatpush1.msra.mxu0 %v70
    %119 = vmatprep.subr.mxu0 0.0
    %120 = vmatpush1.msra.mxu0 %v69
    %121 = vmatprep.subr.mxu0 0.0
    %122 = vmatpush1.msra.mxu0 %v68
    %123 = vmatprep.subr.mxu0 0.0
    %124 = vmatpush2.msra.mxu0 0.0
    %125 = vmatprep.subr.mxu0 0.0
    %126 = vmatpush2.msra.mxu0 0.0
    %127 = vmatprep.subr.mxu0 0.0
    %128 = vmatpush2.msra.mxu0 0.0
    %129 = vmatprep.subr.mxu0 0.0
    %130 = vmatpush2.msra.mxu0 0.0
    %131 = vmatprep.subr.mxu0 0.0
    %132 = vmatpush2.msra.mxu0 0.0
    %133 = vmatprep.subr.mxu0 0.0
    %134 = vmatpush2.msra.mxu0 0.0
    %135 = vmatprep.subr.mxu0 0.0
    %136 = vmatpush2.msra.mxu0 0.0
    %137 = vmatprep.subr.mxu0 0.0
    %138 = vmatpush2.msra.mxu0 0.0
    %139 = vmatprep.subr.mxu0 0.0
    %140 = vmatpush2.msra.mxu0 0.0
    %141 = vmatprep.subr.mxu0 0.0
    %142 = vmatpush2.msra.mxu0 0.0
    %143 = vmatprep.subr.mxu0 0.0
    %144 = vmatpush2.msra.mxu0 0.0
    %145 = vmatprep.subr.mxu0 0.0
    %146 = vmatpush2.msra.mxu0 0.0
    %147 = vmatprep.subr.mxu0 0.0
    %148 = vmatpush2.msra.mxu0 0.0
    %149 = vmatprep.subr.mxu0 0.0
    %150 = vmatpush2.msra.mxu0 0.0
    %151 = vmatprep.subr.mxu0 0.0
    %152 = vmatpush2.msra.mxu0 0.0
    %153 = vmatprep.subr.mxu0 0.0
    %154 = vmatpush2.msra.mxu0 0.0
    %155 = vmatprep.mubr.f32.mxu0 0.0
    %156 = vmatmul.mubr.f32.gmra.mxu0 %v67
    %v157 = vpop.f32.mrf.mxu0
    %v158 = vadd.f32 %v89, %v157
    %v159 = vpop.f32.mrf.mxu0
    %160 = vdwg.mxu0
    %v161 = vmax.f32 %v158, 0.0
    %v162 = vld [vmem:[#allocation4] sm:$0xff]
    %v163 = vld [vmem:[#allocation4 + $0x8] sm:$0xff]
    %v164 = vld [vmem:[#allocation4 + $0x10] sm:$0xff]
    %v165 = vld [vmem:[#allocation4 + $0x18] sm:$0xff]
    %v166 = vld [vmem:[#allocation4 + $0x20] sm:$0xff]
    %v167 = vld [vmem:[#allocation4 + $0x28] sm:$0xff]
    %v168 = vld [vmem:[#allocation4 + $0x30] sm:$0xff]
    %v169 = vld [vmem:[#allocation4 + $0x38] sm:$0xff]
    %v170 = vld [vmem:[#allocation4 + $0x40] sm:$0xff]
    %v171 = vld [vmem:[#allocation4 + $0x48] sm:$0xff]
    %v172 = vld [vmem:[#allocation4 + $0x50] sm:$0xff]
    %v173 = vld [vmem:[#allocation4 + $0x58] sm:$0xff]
    %v174 = vld [vmem:[#allocation4 + $0x60] sm:$0xff]
    %v175 = vld [vmem:[#allocation4 + $0x68] sm:$0xff]
    %v176 = vld [vmem:[#allocation4 + $0x70] sm:$0xff]
    %v177 = vld [vmem:[#allocation4 + $0x78] sm:$0xff]
    %v178 = vld [vmem:[%s4] sm:$0x1]
    %v180 = vlaneseq
    %v181 = vshrl.u32 %v180, 7
    %v182 = vsub.s32 0, %v181
    %v183 = vrot.slane %v178, %v182
    %185 = vmatprep.subr.mxu0 0.0
    %186 = vmatpush1.msra.mxu0 %v177
    %187 = vmatprep.subr.mxu0 0.0
    %188 = vmatpush1.msra.mxu0 %v176
    %189 = vmatprep.subr.mxu0 0.0
    %190 = vmatpush1.msra.mxu0 %v175
    %191 = vmatprep.subr.mxu0 0.0
    %192 = vmatpush1.msra.mxu0 %v174
    %193 = vmatprep.subr.mxu0 0.0
    %194 = vmatpush1.msra.mxu0 %v173
    %195 = vmatprep.subr.mxu0 0.0
    %196 = vmatpush1.msra.mxu0 %v172
    %197 = vmatprep.subr.mxu0 0.0
    %198 = vmatpush1.msra.mxu0 %v171
    %199 = vmatprep.subr.mxu0 0.0
    %200 = vmatpush1.msra.mxu0 %v170
    %201 = vmatprep.subr.mxu0 0.0
    %202 = vmatpush1.msra.mxu0 %v169
    %203 = vmatprep.subr.mxu0 0.0
    %204 = vmatpush1.msra.mxu0 %v168
    %205 = vmatprep.subr.mxu0 0.0
    %206 = vmatpush1.msra.mxu0 %v167
    %207 = vmatprep.subr.mxu0 0.0
    %208 = vmatpush1.msra.mxu0 %v166
    %209 = vmatprep.subr.mxu0 0.0
    %210 = vmatpush1.msra.mxu0 %v165
    %211 = vmatprep.subr.mxu0 0.0
    %212 = vmatpush1.msra.mxu0 %v164
    %213 = vmatprep.subr.mxu0 0.0
    %214 = vmatpush1.msra.mxu0 %v163
    %215 = vmatprep.subr.mxu0 0.0
    %216 = vmatpush1.msra.mxu0 %v162
    %217 = vmatprep.subr.mxu0 0.0
    %218 = vmatpush2.msra.mxu0 0.0
    %219 = vmatprep.subr.mxu0 0.0
    %220 = vmatpush2.msra.mxu0 0.0
    %221 = vmatprep.subr.mxu0 0.0
    %222 = vmatpush2.msra.mxu0 0.0
    %223 = vmatprep.subr.mxu0 0.0
    %224 = vmatpush2.msra.mxu0 0.0
    %225 = vmatprep.subr.mxu0 0.0
    %226 = vmatpush2.msra.mxu0 0.0
    %227 = vmatprep.subr.mxu0 0.0
    %228 = vmatpush2.msra.mxu0 0.0
    %229 = vmatprep.subr.mxu0 0.0
    %230 = vmatpush2.msra.mxu0 0.0
    %231 = vmatprep.subr.mxu0 0.0
    %232 = vmatpush2.msra.mxu0 0.0
    %233 = vmatprep.subr.mxu0 0.0
    %234 = vmatpush2.msra.mxu0 0.0
    %235 = vmatprep.subr.mxu0 0.0
    %236 = vmatpush2.msra.mxu0 0.0
    %237 = vmatprep.subr.mxu0 0.0
    %238 = vmatpush2.msra.mxu0 0.0
    %239 = vmatprep.subr.mxu0 0.0
    %240 = vmatpush2.msra.mxu0 0.0
    %241 = vmatprep.subr.mxu0 0.0
    %242 = vmatpush2.msra.mxu0 0.0
    %243 = vmatprep.subr.mxu0 0.0
    %244 = vmatpush2.msra.mxu0 0.0
    %245 = vmatprep.subr.mxu0 0.0
    %246 = vmatpush2.msra.mxu0 0.0
    %247 = vmatprep.subr.mxu0 0.0
    %248 = vmatpush2.msra.mxu0 0.0
    %249 = vmatprep.mubr.f32.mxu0 0.0
    %250 = vmatmul.mubr.f32.gmra.mxu0 %v161
    %v251 = vpop.f32.mrf.mxu0
    %v252 = vadd.f32 %v183, %v251
    %v253 = vpop.f32.mrf.mxu0
    %254 = vdwg.mxu0
    %v255 = vmax.f32 %v252, 0.0
    %v256 = vld [vmem:[#allocation6] sm:$0xff]
    %v257 = vld [vmem:[#allocation6 + $0x8] sm:$0xff]
    %v258 = vld [vmem:[#allocation6 + $0x10] sm:$0xff]
    %v259 = vld [vmem:[#allocation6 + $0x18] sm:$0xff]
    %v260 = vld [vmem:[#allocation6 + $0x20] sm:$0xff]
    %v261 = vld [vmem:[#allocation6 + $0x28] sm:$0xff]
    %v262 = vld [vmem:[#allocation6 + $0x30] sm:$0xff]
    %v263 = vld [vmem:[#allocation6 + $0x38] sm:$0xff]
    %v264 = vld [vmem:[#allocation6 + $0x40] sm:$0xff]
    %v265 = vld [vmem:[#allocation6 + $0x48] sm:$0xff]
    %v266 = vld [vmem:[#allocation6 + $0x50] sm:$0xff]
    %v267 = vld [vmem:[#allocation6 + $0x58] sm:$0xff]
    %v268 = vld [vmem:[#allocation6 + $0x60] sm:$0xff]
    %v269 = vld [vmem:[#allocation6 + $0x68] sm:$0xff]
    %v270 = vld [vmem:[#allocation6 + $0x70] sm:$0xff]
    %v271 = vld [vmem:[#allocation6 + $0x78] sm:$0xff]
    %v272 = vld [vmem:[%s6] sm:$0x1]
    %v274 = vlaneseq
    %v275 = vshrl.u32 %v274, 7
    %v276 = vsub.s32 0, %v275
    %v277 = vrot.slane %v272, %v276
    %279 = vmatprep.subr.mxu0 0.0
    %280 = vmatpush1.msra.mxu0 %v271
    %281 = vmatprep.subr.mxu0 0.0
    %282 = vmatpush1.msra.mxu0 %v270
    %283 = vmatprep.subr.mxu0 0.0
    %284 = vmatpush1.msra.mxu0 %v269
    %285 = vmatprep.subr.mxu0 0.0
    %286 = vmatpush1.msra.mxu0 %v268
    %287 = vmatprep.subr.mxu0 0.0
    %288 = vmatpush1.msra.mxu0 %v267
    %289 = vmatprep.subr.mxu0 0.0
    %290 = vmatpush1.msra.mxu0 %v266
    %291 = vmatprep.subr.mxu0 0.0
    %292 = vmatpush1.msra.mxu0 %v265
    %293 = vmatprep.subr.mxu0 0.0
    %294 = vmatpush1.msra.mxu0 %v264
    %295 = vmatprep.subr.mxu0 0.0
    %296 = vmatpush1.msra.mxu0 %v263
    %297 = vmatprep.subr.mxu0 0.0
    %298 = vmatpush1.msra.mxu0 %v262
    %299 = vmatprep.subr.mxu0 0.0
    %300 = vmatpush1.msra.mxu0 %v261
    %301 = vmatprep.subr.mxu0 0.0
    %302 = vmatpush1.msra.mxu0 %v260
    %303 = vmatprep.subr.mxu0 0.0
    %304 = vmatpush1.msra.mxu0 %v259
    %305 = vmatprep.subr.mxu0 0.0
    %306 = vmatpush1.msra.mxu0 %v258
    %307 = vmatprep.subr.mxu0 0.0
    %308 = vmatpush1.msra.mxu0 %v257
    %309 = vmatprep.subr.mxu0 0.0
    %310 = vmatpush1.msra.mxu0 %v256
    %311 = vmatprep.subr.mxu0 0.0
    %312 = vmatpush2.msra.mxu0 0.0
    %313 = vmatprep.subr.mxu0 0.0
    %314 = vmatpush2.msra.mxu0 0.0
    %315 = vmatprep.subr.mxu0 0.0
    %316 = vmatpush2.msra.mxu0 0.0
    %317 = vmatprep.subr.mxu0 0.0
    %318 = vmatpush2.msra.mxu0 0.0
    %319 = vmatprep.subr.mxu0 0.0
    %320 = vmatpush2.msra.mxu0 0.0
    %321 = vmatprep.subr.mxu0 0.0
    %322 = vmatpush2.msra.mxu0 0.0
    %323 = vmatprep.subr.mxu0 0.0
    %324 = vmatpush2.msra.mxu0 0.0
    %325 = vmatprep.subr.mxu0 0.0
    %326 = vmatpush2.msra.mxu0 0.0
    %327 = vmatprep.subr.mxu0 0.0
    %328 = vmatpush2.msra.mxu0 0.0
    %329 = vmatprep.subr.mxu0 0.0
    %330 = vmatpush2.msra.mxu0 0.0
    %331 = vmatprep.subr.mxu0 0.0
    %332 = vmatpush2.msra.mxu0 0.0
    %333 = vmatprep.subr.mxu0 0.0
    %334 = vmatpush2.msra.mxu0 0.0
    %335 = vmatprep.subr.mxu0 0.0
    %336 = vmatpush2.msra.mxu0 0.0
    %337 = vmatprep.subr.mxu0 0.0
    %338 = vmatpush2.msra.mxu0 0.0
    %339 = vmatprep.subr.mxu0 0.0
    %340 = vmatpush2.msra.mxu0 0.0
    %341 = vmatprep.subr.mxu0 0.0
    %342 = vmatpush2.msra.mxu0 0.0
    %343 = vmatprep.mubr.f32.mxu0 0.0
    %344 = vmatmul.mubr.f32.gmra.mxu0 %v255
    %v345 = vpop.f32.mrf.mxu0
    %v346 = vadd.f32 %v277, %v345
    %v347 = vpop.f32.mrf.mxu0
    %348 = vdwg.mxu0
    %349 = vst [vmem:[%s7] sm:$0xff] %v346
    // Predicated region
    $region42: #{mlp_generator_forward.1} parent=1 // pred_check
      _
    $region43: #{mlp_generator_forward.1} parent=1 // pred_check_branch
      %351 = sbr.rel (0) target = $region45
    $region44: #{mlp_generator_forward.1} parent=1 // pred_region
      _
    $region45: #{mlp_generator_forward.1} parent=1 // pred_fallthru
      _
    // Predicated region
    $region46: #{mlp_generator_forward.1} parent=1 // pred_check
      _
    $region47: #{mlp_generator_forward.1} parent=1 // pred_check_branch
      %353 = sbr.rel (0) target = $region49
    $region48: #{mlp_generator_forward.1} parent=1 // pred_region
      _
    $region49: #{mlp_generator_forward.1} parent=1 // pred_fallthru
      _
    %354 = vsyncpa [#allocation3], 1
    %355 = vsyncpa [#allocation5], 1

</llo_original>
